<compile_context>
chip_gen: v7x
topology: tpu7x:2x2x1
jax: 0.10.0
libtpu: 0.0.40
codegen_flags: <defaults>
</compile_context>

<pallas_src>
import jax
import jax.numpy as jnp
from jax.experimental import pallas as pl
from jax.experimental.pallas import tpu as pltpu


def _round_up(x, m):
    return ((x + m - 1) // m) * m


def _vmem_capacity_bytes():
    """Physical VMEM of the current TPU generation (fallback: 64 MiB = v7x)."""
    try:
        cap = getattr(pltpu.get_tpu_info(), "vmem_capacity_bytes", None)
        if cap:
            return int(cap)
    except Exception:
        pass
    return 64 << 20


def _resident_spec(block_shape):
    """Constant-block-index (VMEM-resident) spec, single-buffered when supported."""
    try:
        return pl.BlockSpec(block_shape, lambda i: (0, 0),
                            pipeline_mode=pl.Buffered(1))
    except (AttributeError, TypeError):
        # Older API without pipeline_mode: still resident, just double-buffered.
        return pl.BlockSpec(block_shape, lambda i: (0, 0))


# ---------------------------------------------------------------------------
# Kernel
# ---------------------------------------------------------------------------
def _head_kernel(x_ref, wc_ref, w6_ref, w7_ref, pk_ref, bcls_ref, out_ref):
    """One batch tile of the fused head.

    x_ref   : (TM, CHW_pad)   f32   cast to bf16 in-kernel (VPU, hidden under MXU)
    wc_ref  : (CHW_pad, R_pad) bf16  conv weight, flattened & transposed
    w6_ref  : (R_pad, R_pad)   bf16
    w7_ref  : (R_pad, R_pad)   bf16
    pk_ref  : (8, R_pad)       f32   row0=conv_b row1=fc6_b row2=fc7_b row3=cls_w
    bcls_ref: (1,)             f32   SMEM scalar: cls bias
    out_ref : (TM, 128)        f32   score broadcast across lanes (lane-dense store)
    """
    pk = pk_ref[...]
    bc, b6, b7, wcls = pk[0:1, :], pk[1:2, :], pk[2:3, :], pk[3:4, :]
    bcls = bcls_ref[0]

    # conv (full-spatial valid conv == matmul over flattened C*H*W); no activation.
    x = x_ref[...].astype(jnp.bfloat16)
    h = jnp.dot(x, wc_ref[...], preferred_element_type=jnp.float32) + bc
    # fc6 + ReLU  (bf16 operands on the MXU, f32 accumulate / epilogue)
    h = jnp.maximum(
        jnp.dot(h.astype(jnp.bfloat16), w6_ref[...],
                preferred_element_type=jnp.float32) + b6, 0.0)
    # fc7 + ReLU
    h = jnp.maximum(
        jnp.dot(h.astype(jnp.bfloat16), w7_ref[...],
                preferred_element_type=jnp.float32) + b7, 0.0)
    # cls_score (R -> 1): VPU mul + XLU cross-lane reduce instead of an N=1 matmul.
    scores = jnp.sum(h * wcls, axis=-1, keepdims=True) + bcls          # (TM, 1)
    # Lane-dense store: broadcast the score across 128 lanes; wrapper slices col 0.
    out_ref[...] = jnp.broadcast_to(scores, out_ref.shape)


# ---------------------------------------------------------------------------
# Parameter preparation (do ONCE at parameter-load time)
# ---------------------------------------------------------------------------
def prepare_params(params):
    wc = params["convc_w"]                      # (R, C, kh, kw) PyTorch layout
    R, C, kh, kw = wc.shape
    CHW = C * kh * kw
    R_pad = _round_up(R, 128)
    CHW_pad = _round_up(CHW, 128)

    wc_t = wc.reshape(R, CHW).T                 # (CHW, R), matches flatten order
    wc_t = jnp.pad(wc_t, ((0, CHW_pad - CHW), (0, R_pad - R))).astype(jnp.bfloat16)
    w6_t = jnp.pad(params["fc6_w"].T, ((0, R_pad - R),) * 2).astype(jnp.bfloat16)
    w7_t = jnp.pad(params["fc7_w"].T, ((0, R_pad - R),) * 2).astype(jnp.bfloat16)

    # Biases + cls weight packed into one small f32 slab (one resident DMA).
    pack = jnp.zeros((8, R_pad), jnp.float32)
    pack = pack.at[0, :R].set(params["convc_b"])
    pack = pack.at[1, :R].set(params["fc6_b"])
    pack = pack.at[2, :R].set(params["fc7_b"])
    pack = pack.at[3, :R].set(params["cls_w"][0])
    cls_b = params["cls_b"].astype(jnp.float32).reshape(1)   # SMEM scalar

    return {
        "wc_t": wc_t, "w6_t": w6_t, "w7_t": w7_t, "pack": pack, "cls_b": cls_b,
        "C": C, "spatial": (kh, kw),
        "CHW": CHW, "CHW_pad": CHW_pad, "R_pad": R_pad,
    }


# ---------------------------------------------------------------------------
# Batch-tile selection (generation-aware)
# ---------------------------------------------------------------------------
def _pick_tm(N, CHW_pad, weight_bytes, vmem_cap):
    headroom = 6 << 20
    budget = vmem_cap - headroom - weight_bytes
    # per-row VMEM: double-buffered f32 x tile + double-buffered f32 out tile.
    per_row = 2 * CHW_pad * 4 + 2 * 128 * 4
    tm_fit = budget // per_row if budget > 0 else 8
    if tm_fit >= 128:
        tm_fit = min((tm_fit // 128) * 128, 512)
    else:
        tm_fit = max((tm_fit // 8) * 8, 8)

    if N > 512:
        # >= 4 grid steps: pipeline steady state + dual-TC sharding on v7x.
        tm = min(tm_fit, max(128, (N // 4 // 128) * 128))
    elif N > 128:
        tm = min(tm_fit, 128)            # >= 2 grid steps
    else:
        tm = min(tm_fit, max(8, _round_up(N, 8)))   # tiny N: one ragged tile
    return max(int(tm), 8)


# ---------------------------------------------------------------------------
# Wrapper
# ---------------------------------------------------------------------------
def conv_mlp_head(x, prep, *, tm=None):
    """x: (N, C, H, W) float32. Returns (N, 1) float32 scores."""
    N, C, H, W = x.shape
    assert (H, W) == prep["spatial"] and C == prep["C"], \
        "ConvMLPHead requires conv kernel size == input spatial size"

    CHW, CHW_pad, R_pad = prep["CHW"], prep["CHW_pad"], prep["R_pad"]
    out_lanes = 128

    vmem_cap = _vmem_capacity_bytes()
    # Resident weights are single-buffered (pl.Buffered(1)).
    weight_bytes = 2 * (prep["wc_t"].size + prep["w6_t"].size + prep["w7_t"].size) \
                   + 4 * prep["pack"].size
    if tm is None:
        tm = _pick_tm(N, CHW_pad, weight_bytes, vmem_cap)

    grid = (pl.cdiv(N, tm),)   # ragged last tile; its garbage rows never leave VMEM

    # x stays f32: reshape is a free view; no wrapper-side bf16 copy of x.
    x_flat = x.reshape(N, CHW)
    if CHW_pad != CHW:
        x_flat = jnp.pad(x_flat, ((0, 0), (0, CHW_pad - CHW)))

    tile_bytes = 2 * (tm * CHW_pad * 4) + 2 * (tm * out_lanes * 4)
    vmem_limit = int(min(vmem_cap - (2 << 20),
                         max(weight_bytes + tile_bytes + (4 << 20), 16 << 20)))

    # NOTE: if a future config makes the resident conv weight itself exceed the
    # VMEM budget, split the conv contraction over a second ("arbitrary") grid
    # axis with a (tm, R_pad) f32 accumulator; not needed at R<=1024, CHW<=12544.
    out = pl.pallas_call(
        _head_kernel,
        out_shape=jax.ShapeDtypeStruct((N, out_lanes), jnp.float32),
        grid=grid,
        in_specs=[
            # x tile: pipelined (double-buffered), read f32 straight from HBM.
            pl.BlockSpec((tm, CHW_pad), lambda i: (i, 0)),
            # Weights / packed biases: VMEM-resident, single-buffered.
            _resident_spec((CHW_pad, R_pad)),   # conv W
            _resident_spec((R_pad, R_pad)),     # fc6 W
            _resident_spec((R_pad, R_pad)),     # fc7 W
            _resident_spec((8, R_pad)),         # packed biases + cls weight
            # cls bias: scalar via SMEM.
            pl.BlockSpec(memory_space=pltpu.MemorySpace.SMEM),
        ],
        out_specs=pl.BlockSpec((tm, out_lanes), lambda i: (i, 0)),
        compiler_params=pltpu.CompilerParams(
            dimension_semantics=("parallel",),   # megacore sharding on v7x
            vmem_limit_bytes=vmem_limit),
    )(x_flat, prep["wc_t"], prep["w6_t"], prep["w7_t"], prep["pack"],
      prep["cls_b"])

    return out[:N, 0:1]


# ---------------------------------------------------------------------------
# Init + pure-JAX reference (mirrors the PyTorch forward)
# ---------------------------------------------------------------------------
def init_params(key, in_channels, representation_size, v):
    ks = jax.random.split(key, 8)
    scale = 0.05
    R = representation_size
    return {
        "convc_w": scale * jax.random.normal(ks[0], (R, in_channels, v, v), jnp.float32),
        "convc_b": scale * jax.random.normal(ks[1], (R,), jnp.float32),
        "fc6_w":   scale * jax.random.normal(ks[2], (R, R), jnp.float32),
        "fc6_b":   scale * jax.random.normal(ks[3], (R,), jnp.float32),
        "fc7_w":   scale * jax.random.normal(ks[4], (R, R), jnp.float32),
        "fc7_b":   scale * jax.random.normal(ks[5], (R,), jnp.float32),
        "cls_w":   scale * jax.random.normal(ks[6], (1, R), jnp.float32),
        "cls_b":   scale * jax.random.normal(ks[7], (1,), jnp.float32),
    }


def reference(x, params):
    N, C, H, W = x.shape
    R = params["convc_w"].shape[0]
    xf = x.reshape(N, C * H * W)
    h = xf @ params["convc_w"].reshape(R, -1).T + params["convc_b"]
    h = jnp.maximum(h @ params["fc6_w"].T + params["fc6_b"], 0.0)
    h = jnp.maximum(h @ params["fc7_w"].T + params["fc7_b"], 0.0)
    return h @ params["cls_w"].T + params["cls_b"]


if __name__ == "__main__":
    # Small shapes consistent with the module: batch=2, in_channels=4,
    # spatial=v=16, representation_size=32.  (The kernel is tuned for the
    # production regime, batch >= 256 / R = 1024; below ~256 plain XLA wins.)
    batch, in_channels, v, repr_size = 2, 4, 16, 32

    key = jax.random.PRNGKey(0)
    kx, kp = jax.random.split(key)
    x = jax.random.normal(kx, (batch, in_channels, v, v), jnp.float32)
    params = init_params(kp, in_channels, repr_size, v)

    prep = prepare_params(params)        # hoisted: done once per parameter set
    scores = conv_mlp_head(x, prep)
    jax.block_until_ready(scores)

    ref = reference(x, params)
    assert scores.shape == (batch, 1)
    # bf16 matmul operands (f32 accumulation) => relaxed tolerance vs f32 ref.
    assert jnp.allclose(scores, ref, atol=1e-2, rtol=1e-2), \
        f"max abs diff {jnp.max(jnp.abs(scores - ref))}"

    print("KERNEL_OK")
</pallas_src>

<mosaic_0001>
module attributes {stable_mosaic.version = 11 : i64} {
  func.func @_head_kernel(%arg0: i32, %arg1: memref<8x1024xf32, #tpu.memory_space<vmem>>, %arg2: memref<1024x128xbf16, #tpu.memory_space<vmem>>, %arg3: memref<128x128xbf16, #tpu.memory_space<vmem>>, %arg4: memref<128x128xbf16, #tpu.memory_space<vmem>>, %arg5: memref<8x128xf32, #tpu.memory_space<vmem>>, %arg6: memref<1xf32, #tpu.memory_space<smem>>, %arg7: memref<8x128xf32, #tpu.memory_space<vmem>>) attributes {dimension_semantics = [#tpu.dimension_semantics<parallel>], iteration_bounds = array<i64: 1>, scalar_prefetch = 0 : i64, scratch_operands = 0 : i64, tpu.core_type = #tpu.core_type<tc>, window_params = [{transform_indices = @transform_0, window_bounds = array<i64: 8, 1024>}, {pipeline_mode = #tpu.pipeline_mode<synchronous>, transform_indices = @transform_1, window_bounds = array<i64: 1024, 128>}, {pipeline_mode = #tpu.pipeline_mode<synchronous>, transform_indices = @transform_2, window_bounds = array<i64: 128, 128>}, {pipeline_mode = #tpu.pipeline_mode<synchronous>, transform_indices = @transform_3, window_bounds = array<i64: 128, 128>}, {pipeline_mode = #tpu.pipeline_mode<synchronous>, transform_indices = @transform_4, window_bounds = array<i64: 8, 128>}, {transform_indices = @transform_5, window_bounds = array<i64: 1>}, {transform_indices = @transform_6, window_bounds = array<i64: 8, 128>}]} {
    %c0 = arith.constant 0 : index
    %c0_0 = arith.constant 0 : index
    %0 = vector.load %arg5[%c0, %c0_0] : memref<8x128xf32, #tpu.memory_space<vmem>>, vector<8x128xf32>
    %1 = vector.extract_strided_slice %0 {offsets = [0, 0], sizes = [1, 128], strides = [1, 1]} : vector<8x128xf32> to vector<1x128xf32>
    %2 = vector.extract_strided_slice %0 {offsets = [1, 0], sizes = [1, 128], strides = [1, 1]} : vector<8x128xf32> to vector<1x128xf32>
    %3 = vector.extract_strided_slice %0 {offsets = [2, 0], sizes = [1, 128], strides = [1, 1]} : vector<8x128xf32> to vector<1x128xf32>
    %4 = vector.extract_strided_slice %0 {offsets = [3, 0], sizes = [1, 128], strides = [1, 1]} : vector<8x128xf32> to vector<1x128xf32>
    %c0_1 = arith.constant 0 : index
    %5 = memref.load %arg6[%c0_1] : memref<1xf32, #tpu.memory_space<smem>>
    %c0_2 = arith.constant 0 : index
    %c0_3 = arith.constant 0 : index
    %6 = vector.load %arg1[%c0_2, %c0_3] : memref<8x1024xf32, #tpu.memory_space<vmem>>, vector<8x1024xf32>
    %7 = arith.truncf %6 : vector<8x1024xf32> to vector<8x1024xbf16>
    %c0_4 = arith.constant 0 : index
    %c0_5 = arith.constant 0 : index
    %8 = vector.load %arg2[%c0_4, %c0_5] : memref<1024x128xbf16, #tpu.memory_space<vmem>>, vector<1024x128xbf16>
    %cst = arith.constant dense<0.000000e+00> : vector<8x128xf32>
    %9 = tpu.matmul %7, %8, %cst {dimension_numbers = #tpu.dot_dimension_numbers<[1], [0], [0], [1], [0, 0, 1, 1], [], []>} : vector<8x1024xbf16>, vector<1024x128xbf16>, vector<8x128xf32> -> vector<8x128xf32>
    %10 = vector.broadcast %1 : vector<1x128xf32> to vector<8x128xf32>
    %11 = arith.addf %9, %10 : vector<8x128xf32>
    %12 = arith.truncf %11 : vector<8x128xf32> to vector<8x128xbf16>
    %c0_6 = arith.constant 0 : index
    %c0_7 = arith.constant 0 : index
    %13 = vector.load %arg3[%c0_6, %c0_7] : memref<128x128xbf16, #tpu.memory_space<vmem>>, vector<128x128xbf16>
    %cst_8 = arith.constant dense<0.000000e+00> : vector<8x128xf32>
    %14 = tpu.matmul %12, %13, %cst_8 {dimension_numbers = #tpu.dot_dimension_numbers<[1], [0], [0], [1], [0, 0, 1, 1], [], []>} : vector<8x128xbf16>, vector<128x128xbf16>, vector<8x128xf32> -> vector<8x128xf32>
    %15 = vector.broadcast %2 : vector<1x128xf32> to vector<8x128xf32>
    %16 = arith.addf %14, %15 : vector<8x128xf32>
    %cst_9 = arith.constant 0.000000e+00 : f32
    %17 = vector.broadcast %cst_9 : f32 to vector<8x128xf32>
    %18 = arith.maximumf %16, %17 : vector<8x128xf32>
    %19 = arith.truncf %18 : vector<8x128xf32> to vector<8x128xbf16>
    %c0_10 = arith.constant 0 : index
    %c0_11 = arith.constant 0 : index
    %20 = vector.load %arg4[%c0_10, %c0_11] : memref<128x128xbf16, #tpu.memory_space<vmem>>, vector<128x128xbf16>
    %cst_12 = arith.constant dense<0.000000e+00> : vector<8x128xf32>
    %21 = tpu.matmul %19, %20, %cst_12 {dimension_numbers = #tpu.dot_dimension_numbers<[1], [0], [0], [1], [0, 0, 1, 1], [], []>} : vector<8x128xbf16>, vector<128x128xbf16>, vector<8x128xf32> -> vector<8x128xf32>
    %22 = vector.broadcast %3 : vector<1x128xf32> to vector<8x128xf32>
    %23 = arith.addf %21, %22 : vector<8x128xf32>
    %cst_13 = arith.constant 0.000000e+00 : f32
    %24 = vector.broadcast %cst_13 : f32 to vector<8x128xf32>
    %25 = arith.maximumf %23, %24 : vector<8x128xf32>
    %26 = vector.broadcast %4 : vector<1x128xf32> to vector<8x128xf32>
    %27 = arith.mulf %25, %26 : vector<8x128xf32>
    %cst_14 = arith.constant dense<0.000000e+00> : vector<8xf32>
    %28 = vector.multi_reduction <add>, %27, %cst_14 [1] : vector<8x128xf32> to vector<8xf32>
    %29 = vector.shape_cast %28 : vector<8xf32> to vector<8x1xf32>
    %30 = vector.broadcast %5 : f32 to vector<8x1xf32>
    %31 = arith.addf %29, %30 : vector<8x1xf32>
    %32 = vector.shape_cast %31 : vector<8x1xf32> to vector<8x1xf32>
    %33 = vector.broadcast %32 : vector<8x1xf32> to vector<8x128xf32>
    %c0_15 = arith.constant 0 : index
    %c0_16 = arith.constant 0 : index
    %34 = vector.load %arg7[%c0_15, %c0_16] : memref<8x128xf32, #tpu.memory_space<vmem>>, vector<8x128xf32>
    tpu.vector_store %arg7[%c0_15, %c0_16], %33 {strides = array<i32>} : memref<8x128xf32, #tpu.memory_space<vmem>>, vector<8x128xf32>,
    return
  }
  func.func @transform_0(%arg0: i32) -> (i32, i32) {
    %c0_i32 = arith.constant 0 : i32
    %c0_i32_0 = arith.constant 0 : i32
    return %arg0, %c0_i32 : i32, i32
  }
  func.func @transform_1(%arg0: i32) -> (i32, i32) {
    %c0_i32 = arith.constant 0 : i32
    %c0_i32_0 = arith.constant 0 : i32
    %c0_i32_1 = arith.constant 0 : i32
    return %c0_i32, %c0_i32_0 : i32, i32
  }
  func.func @transform_2(%arg0: i32) -> (i32, i32) {
    %c0_i32 = arith.constant 0 : i32
    %c0_i32_0 = arith.constant 0 : i32
    %c0_i32_1 = arith.constant 0 : i32
    return %c0_i32, %c0_i32_0 : i32, i32
  }
  func.func @transform_3(%arg0: i32) -> (i32, i32) {
    %c0_i32 = arith.constant 0 : i32
    %c0_i32_0 = arith.constant 0 : i32
    %c0_i32_1 = arith.constant 0 : i32
    return %c0_i32, %c0_i32_0 : i32, i32
  }
  func.func @transform_4(%arg0: i32) -> (i32, i32) {
    %c0_i32 = arith.constant 0 : i32
    %c0_i32_0 = arith.constant 0 : i32
    %c0_i32_1 = arith.constant 0 : i32
    return %c0_i32, %c0_i32_0 : i32, i32
  }
  func.func @transform_5(%arg0: i32) -> i32 {
    %c0_i32 = arith.constant 0 : i32
    %c0_i32_0 = arith.constant 0 : i32
    return %c0_i32 : i32
  }
  func.func @transform_6(%arg0: i32) -> (i32, i32) {
    %c0_i32 = arith.constant 0 : i32
    %c0_i32_0 = arith.constant 0 : i32
    return %arg0, %c0_i32 : i32, i32
  }
}

</mosaic_0001>

<llo_original>
// kernel: tpu_custom_call.1
$region0: #{tpu_custom_call.1}
  #allocation0 [shape = 'u32[]', space=smem, size = 0x4, offset = 0x4, fixed_abs, tag = 'smem constant byte address 0x4 - core index']
  #allocation1 [shape = 'u32[144,128]{1,0:T(1,128)}', space=vmem, size = 0x12000, scoped, tag = 'internal scratch']
  #allocation2 [shape = 'f32[1]{0:T(128)S(6)}', space=smem, size = 0x200, scoped, tag = 'scoped memory for tpu_custom_call.1']
  %s0 = inlined_call_operand.hbm [shape: f32[2,1024], index: 0, kind: input, shape index: {}]
  %s1 = inlined_call_operand.hbm [shape: bf16[1024,128], index: 1, kind: input, shape index: {}]
  %s2 = inlined_call_operand.hbm [shape: bf16[128,128], index: 2, kind: input, shape index: {}]
  %s3 = inlined_call_operand.hbm [shape: bf16[128,128], index: 3, kind: input, shape index: {}]
  %s4 = inlined_call_operand.vmem [shape: f32[8,128], index: 4, kind: input, shape index: {}]
  %s5 = inlined_call_operand.<no memory space> [shape: f32[1], index: 5, kind: input, shape index: {}]
  %s6 = inlined_call_operand.hbm [shape: f32[2,128], index: 6, kind: output, shape index: {}]
  %s7 = sld [smem:[#allocation0]]
  $region50: #{tpu_custom_call.1} parent=0
    _
  %s9 = ssub.s32 1, %s7
  %s10 = scalar_select 0, %s9, %s7
  %11 = sst [smem:[#allocation2]] %s5
  $region1: #{tpu_custom_call.1} parent=0
    #allocation3 [shape = 'u8[32768]{0}', space=vmem, size = 0x8000, scoped, tag = 'input window, operand 0, single buffered']
    #allocation4 [shape = 's32[1]{0}', space=sflag, size = 0x4, scoped, tag = 'scoped memory for tpu_custom_call.1']
    #allocation5 [shape = 's32[1]{0}', space=sflag, size = 0x4, scoped, tag = 'scoped memory for tpu_custom_call.1']
    #allocation6 [shape = 'u8[262144]{0}', space=vmem, size = 0x40000, scoped, tag = 'input window, operand 1, single buffered']
    #allocation7 [shape = 's32[1]{0}', space=sflag, size = 0x4, scoped, tag = 'scoped memory for tpu_custom_call.1']
    #allocation8 [shape = 'u8[32768]{0}', space=vmem, size = 0x8000, scoped, tag = 'input window, operand 2, single buffered']
    #allocation9 [shape = 'u8[32768]{0}', space=vmem, size = 0x8000, scoped, tag = 'input window, operand 3, single buffered']
    #allocation10 [shape = 's32[1]{0}', space=sflag, size = 0x4, scoped, tag = 'scoped memory for tpu_custom_call.1']
    #allocation11 [shape = 'u8[4096]{0}', space=vmem, size = 0x1000, scoped, tag = 'output window, operand 0, single buffered']
    %12 = vsyncpa [#allocation4], 0
    %13 = vsyncpa [#allocation7], 0
    %14 = vsyncpa [#allocation10], 0
    %15 = vsyncpa [#allocation5], 0
    // Predicated region
    $region2: #{tpu_custom_call.1} parent=1 // pred_check
      _
    $region3: #{tpu_custom_call.1} parent=1 // pred_check_branch
      %17 = sbr.rel (0) target = $region5
    $region4: #{tpu_custom_call.1} parent=1 // pred_region
      %s19 = ssub.s32 1024, 256
      %20 = vsyncadd [#allocation4], %s19
      %s21 = sshll.u32 [#allocation3], 4
      %s22 = int_to_ptr.vmem [resolvable:$true] %s21
      %27 = dma.hbm_to_vmem [thread:$0]  %s0, 256, %s22, [#allocation4], 256, 256, 16
    $region5: #{tpu_custom_call.1} parent=1 // pred_fallthru
      _
    // Predicated region
    $region6: #{tpu_custom_call.1} parent=1 // pred_check
      _
    $region7: #{tpu_custom_call.1} parent=1 // pred_check_branch
      %29 = sbr.rel (0) target = $region9
    $region8: #{tpu_custom_call.1} parent=1 // pred_region
      %s31 = ssub.s32 8192, 8192
      %32 = vsyncadd [#allocation7], %s31
      %s33 = sshll.u32 [#allocation6], 4
      %s34 = int_to_ptr.vmem [resolvable:$true] %s33
      %39 = dma.hbm_to_vmem [thread:$0]  %s1, 8192, %s34, [#allocation7], 64, 64, 4
    $region9: #{tpu_custom_call.1} parent=1 // pred_fallthru
      _
    // Predicated region
    $region10: #{tpu_custom_call.1} parent=1 // pred_check
      _
    $region11: #{tpu_custom_call.1} parent=1 // pred_check_branch
      %41 = sbr.rel (0) target = $region13
    $region12: #{tpu_custom_call.1} parent=1 // pred_region
      %s43 = ssub.s32 1024, 1024
      %44 = vsyncadd [#allocation7], %s43
      %s45 = sshll.u32 [#allocation8], 4
      %s46 = int_to_ptr.vmem [resolvable:$true] %s45
      %51 = dma.hbm_to_vmem [thread:$0]  %s2, 1024, %s46, [#allocation7], 64, 64, 4
    $region13: #{tpu_custom_call.1} parent=1 // pred_fallthru
      _
    // Predicated region
    $region14: #{tpu_custom_call.1} parent=1 // pred_check
      _
    $region15: #{tpu_custom_call.1} parent=1 // pred_check_branch
      %53 = sbr.rel (0) target = $region17
    $region16: #{tpu_custom_call.1} parent=1 // pred_region
      %s55 = ssub.s32 1024, 1024
      %56 = vsyncadd [#allocation10], %s55
      %s57 = sshll.u32 [#allocation9], 4
      %s58 = int_to_ptr.vmem [resolvable:$true] %s57
      %63 = dma.hbm_to_vmem [thread:$0]  %s3, 1024, %s58, [#allocation10], 64, 64, 4
    $region17: #{tpu_custom_call.1} parent=1 // pred_fallthru
      _
    // Predicated region
    $region18: #{tpu_custom_call.1} parent=1 // pred_check
      _
    $region19: #{tpu_custom_call.1} parent=1 // pred_check_branch
      %65 = sbr.rel (0) target = $region21
    $region20: #{tpu_custom_call.1} parent=1 // pred_region
      _
    $region21: #{tpu_custom_call.1} parent=1 // pred_fallthru
      _
    // Predicated region
    $region22: #{tpu_custom_call.1} parent=1 // pred_check
      _
    $region23: #{tpu_custom_call.1} parent=1 // pred_check_branch
      %67 = sbr.rel (0) target = $region25
    $region24: #{tpu_custom_call.1} parent=1 // pred_region
      _
    $region25: #{tpu_custom_call.1} parent=1 // pred_fallthru
      _
    // Predicated region
    $region26: #{tpu_custom_call.1} parent=1 // pred_check
      _
    $region27: #{tpu_custom_call.1} parent=1 // pred_check_branch
      %69 = sbr.rel (0) target = $region29
    $region28: #{tpu_custom_call.1} parent=1 // pred_region
      %70 = dma.done [#allocation4], 1024
    $region29: #{tpu_custom_call.1} parent=1 // pred_fallthru
      _
    // Predicated region
    $region30: #{tpu_custom_call.1} parent=1 // pred_check
      _
    $region31: #{tpu_custom_call.1} parent=1 // pred_check_branch
      %72 = sbr.rel (0) target = $region33
    $region32: #{tpu_custom_call.1} parent=1 // pred_region
      %73 = dma.done [#allocation7], 8192
    $region33: #{tpu_custom_call.1} parent=1 // pred_fallthru
      _
    // Predicated region
    $region34: #{tpu_custom_call.1} parent=1 // pred_check
      _
    $region35: #{tpu_custom_call.1} parent=1 // pred_check_branch
      %75 = sbr.rel (0) target = $region37
    $region36: #{tpu_custom_call.1} parent=1 // pred_region
      %76 = dma.done [#allocation7], 1024
    $region37: #{tpu_custom_call.1} parent=1 // pred_fallthru
      _
    // Predicated region
    $region38: #{tpu_custom_call.1} parent=1 // pred_check
      _
    $region39: #{tpu_custom_call.1} parent=1 // pred_check_branch
      %78 = sbr.rel (0) target = $region41
    $region40: #{tpu_custom_call.1} parent=1 // pred_region
      %79 = dma.done [#allocation10], 1024
    $region41: #{tpu_custom_call.1} parent=1 // pred_fallthru
      _
    %v81 = vld [vmem:[%s4] sm:$0xff]
    %s82 = sld [smem:[#allocation2]]
    %v83 = vld [vmem:[#allocation3] sm:$0xff]
    %v84 = vld [vmem:[#allocation3 + $0x8] sm:$0xff]
    %v85 = vld [vmem:[#allocation3 + $0x10] sm:$0xff]
    %v86 = vld [vmem:[#allocation3 + $0x18] sm:$0xff]
    %v87 = vld [vmem:[#allocation3 + $0x20] sm:$0xff]
    %v88 = vld [vmem:[#allocation3 + $0x28] sm:$0xff]
    %v89 = vld [vmem:[#allocation3 + $0x30] sm:$0xff]
    %v90 = vld [vmem:[#allocation3 + $0x38] sm:$0xff]
    %v99 = vcombine.low %v83, %v85
    %v100 = vcombine.high %v83, %v85
    %v101 = vcombine.low %v87, %v89
    %v102 = vcombine.high %v87, %v89
    %v104 = vunpack.c.l.s4 1983009808
    %v105 = vunpack.c.0.s8 %v104
    %v106 = vlaneseq
    %v107 = vshrl.u32 %v106, 7
    %v108 = vsub.s32 %v105, %v107
    %v109 = vrot.slane %v99, %v108
    %v111 = vunpack.c.l.s4 1983009808
    %v112 = vunpack.c.0.s8 %v111
    %v113 = vlaneseq
    %v114 = vshrl.u32 %v113, 7
    %v115 = vsub.s32 %v112, %v114
    %v116 = vrot.slane %v100, %v115
    %v118 = vunpack.c.l.s4 1983009808
    %v119 = vunpack.c.0.s8 %v118
    %v120 = vlaneseq
    %v121 = vshrl.u32 %v120, 7
    %v122 = vsub.s32 %v119, %v121
    %v123 = vrot.slane %v101, %v122
    %v125 = vunpack.c.l.s4 1983009808
    %v126 = vunpack.c.0.s8 %v125
    %v127 = vlaneseq
    %v128 = vshrl.u32 %v127, 7
    %v129 = vsub.s32 %v126, %v128
    %v130 = vrot.slane %v102, %v129
    %v131 = vcombine.low %v109, %v123
    %v132 = vcombine.high %v109, %v123
    %v133 = vcombine.low %v116, %v130
    %v134 = vcombine.high %v116, %v130
    %v135 = vcombine.low %v84, %v86
    %v136 = vcombine.high %v84, %v86
    %v137 = vcombine.low %v88, %v90
    %v138 = vcombine.high %v88, %v90
    %v140 = vunpack.c.l.s4 1983009808
    %v141 = vunpack.c.0.s8 %v140
    %v142 = vlaneseq
    %v143 = vshrl.u32 %v142, 7
    %v144 = vsub.s32 %v141, %v143
    %v145 = vrot.slane %v135, %v144
    %v147 = vunpack.c.l.s4 1983009808
    %v148 = vunpack.c.0.s8 %v147
    %v149 = vlaneseq
    %v150 = vshrl.u32 %v149, 7
    %v151 = vsub.s32 %v148, %v150
    %v152 = vrot.slane %v136, %v151
    %v154 = vunpack.c.l.s4 1983009808
    %v155 = vunpack.c.0.s8 %v154
    %v156 = vlaneseq
    %v157 = vshrl.u32 %v156, 7
    %v158 = vsub.s32 %v155, %v157
    %v159 = vrot.slane %v137, %v158
    %v161 = vunpack.c.l.s4 1983009808
    %v162 = vunpack.c.0.s8 %v161
    %v163 = vlaneseq
    %v164 = vshrl.u32 %v163, 7
    %v165 = vsub.s32 %v162, %v164
    %v166 = vrot.slane %v138, %v165
    %v167 = vcombine.low %v145, %v159
    %v168 = vcombine.high %v145, %v159
    %v169 = vcombine.low %v152, %v166
    %v170 = vcombine.high %v152, %v166
    %v179 = vpack.c.bf16 %v131, %v131
    %v180 = vpack.c.bf16 %v132, %v132
    %v181 = vpack.c.bf16 %v133, %v133
    %v182 = vpack.c.bf16 %v134, %v134
    %v183 = vpack.c.bf16 %v167, %v167
    %v184 = vpack.c.bf16 %v168, %v168
    %v185 = vpack.c.bf16 %v169, %v169
    %v186 = vpack.c.bf16 %v170, %v170
    %v187 = vld [vmem:[#allocation6] sm:$0xf]
    %v188 = vld [vmem:[#allocation6 + $0x4] sm:$0xf]
    %v189 = vld [vmem:[#allocation6 + $0x8] sm:$0xf]
    %v190 = vld [vmem:[#allocation6 + $0xc] sm:$0xf]
    %v191 = vld [vmem:[#allocation6 + $0x10] sm:$0xf]
    %v192 = vld [vmem:[#allocation6 + $0x14] sm:$0xf]
    %v193 = vld [vmem:[#allocation6 + $0x18] sm:$0xf]
    %v194 = vld [vmem:[#allocation6 + $0x1c] sm:$0xf]
    %v195 = vld [vmem:[#allocation6 + $0x20] sm:$0xf]
    %v196 = vld [vmem:[#allocation6 + $0x24] sm:$0xf]
    %v197 = vld [vmem:[#allocation6 + $0x28] sm:$0xf]
    %v198 = vld [vmem:[#allocation6 + $0x2c] sm:$0xf]
    %v199 = vld [vmem:[#allocation6 + $0x30] sm:$0xf]
    %v200 = vld [vmem:[#allocation6 + $0x34] sm:$0xf]
    %v201 = vld [vmem:[#allocation6 + $0x38] sm:$0xf]
    %v202 = vld [vmem:[#allocation6 + $0x3c] sm:$0xf]
    %v203 = vld [vmem:[#allocation6 + $0x40] sm:$0xf]
    %v204 = vld [vmem:[#allocation6 + $0x44] sm:$0xf]
    %v205 = vld [vmem:[#allocation6 + $0x48] sm:$0xf]
    %v206 = vld [vmem:[#allocation6 + $0x4c] sm:$0xf]
    %v207 = vld [vmem:[#allocation6 + $0x50] sm:$0xf]
    %v208 = vld [vmem:[#allocation6 + $0x54] sm:$0xf]
    %v209 = vld [vmem:[#allocation6 + $0x58] sm:$0xf]
    %v210 = vld [vmem:[#allocation6 + $0x5c] sm:$0xf]
    %v211 = vld [vmem:[#allocation6 + $0x60] sm:$0xf]
    %v212 = vld [vmem:[#allocation6 + $0x64] sm:$0xf]
    %v213 = vld [vmem:[#allocation6 + $0x68] sm:$0xf]
    %v214 = vld [vmem:[#allocation6 + $0x6c] sm:$0xf]
    %v215 = vld [vmem:[#allocation6 + $0x70] sm:$0xf]
    %v216 = vld [vmem:[#allocation6 + $0x74] sm:$0xf]
    %v217 = vld [vmem:[#allocation6 + $0x78] sm:$0xf]
    %v218 = vld [vmem:[#allocation6 + $0x7c] sm:$0xf]
    %v219 = vld [vmem:[#allocation6 + $0x80] sm:$0xf]
    %v220 = vld [vmem:[#allocation6 + $0x84] sm:$0xf]
    %v221 = vld [vmem:[#allocation6 + $0x88] sm:$0xf]
    %v222 = vld [vmem:[#allocation6 + $0x8c] sm:$0xf]
    %v223 = vld [vmem:[#allocation6 + $0x90] sm:$0xf]
    %v224 = vld [vmem:[#allocation6 + $0x94] sm:$0xf]
    %v225 = vld [vmem:[#allocation6 + $0x98] sm:$0xf]
    %v226 = vld [vmem:[#allocation6 + $0x9c] sm:$0xf]
    %v227 = vld [vmem:[#allocation6 + $0xa0] sm:$0xf]
    %v228 = vld [vmem:[#allocation6 + $0xa4] sm:$0xf]
    %v229 = vld [vmem:[#allocation6 + $0xa8] sm:$0xf]
    %v230 = vld [vmem:[#allocation6 + $0xac] sm:$0xf]
    %v231 = vld [vmem:[#allocation6 + $0xb0] sm:$0xf]
    %v232 = vld [vmem:[#allocation6 + $0xb4] sm:$0xf]
    %v233 = vld [vmem:[#allocation6 + $0xb8] sm:$0xf]
    %v234 = vld [vmem:[#allocation6 + $0xbc] sm:$0xf]
    %v235 = vld [vmem:[#allocation6 + $0xc0] sm:$0xf]
    %v236 = vld [vmem:[#allocation6 + $0xc4] sm:$0xf]
    %v237 = vld [vmem:[#allocation6 + $0xc8] sm:$0xf]
    %v238 = vld [vmem:[#allocation6 + $0xcc] sm:$0xf]
    %v239 = vld [vmem:[#allocation6 + $0xd0] sm:$0xf]
    %v240 = vld [vmem:[#allocation6 + $0xd4] sm:$0xf]
    %v241 = vld [vmem:[#allocation6 + $0xd8] sm:$0xf]
    %v242 = vld [vmem:[#allocation6 + $0xdc] sm:$0xf]
    %v243 = vld [vmem:[#allocation6 + $0xe0] sm:$0xf]
    %v244 = vld [vmem:[#allocation6 + $0xe4] sm:$0xf]
    %v245 = vld [vmem:[#allocation6 + $0xe8] sm:$0xf]
    %v246 = vld [vmem:[#allocation6 + $0xec] sm:$0xf]
    %v247 = vld [vmem:[#allocation6 + $0xf0] sm:$0xf]
    %v248 = vld [vmem:[#allocation6 + $0xf4] sm:$0xf]
    %v249 = vld [vmem:[#allocation6 + $0xf8] sm:$0xf]
    %v250 = vld [vmem:[#allocation6 + $0xfc] sm:$0xf]
    %v251 = vld [vmem:[#allocation6 + $0x100] sm:$0xf]
    %v252 = vld [vmem:[#allocation6 + $0x104] sm:$0xf]
    %v253 = vld [vmem:[#allocation6 + $0x108] sm:$0xf]
    %v254 = vld [vmem:[#allocation6 + $0x10c] sm:$0xf]
    %v255 = vld [vmem:[#allocation6 + $0x110] sm:$0xf]
    %v256 = vld [vmem:[#allocation6 + $0x114] sm:$0xf]
    %v257 = vld [vmem:[#allocation6 + $0x118] sm:$0xf]
    %v258 = vld [vmem:[#allocation6 + $0x11c] sm:$0xf]
    %v259 = vld [vmem:[#allocation6 + $0x120] sm:$0xf]
    %v260 = vld [vmem:[#allocation6 + $0x124] sm:$0xf]
    %v261 = vld [vmem:[#allocation6 + $0x128] sm:$0xf]
    %v262 = vld [vmem:[#allocation6 + $0x12c] sm:$0xf]
    %v263 = vld [vmem:[#allocation6 + $0x130] sm:$0xf]
    %v264 = vld [vmem:[#allocation6 + $0x134] sm:$0xf]
    %v265 = vld [vmem:[#allocation6 + $0x138] sm:$0xf]
    %v266 = vld [vmem:[#allocation6 + $0x13c] sm:$0xf]
    %v267 = vld [vmem:[#allocation6 + $0x140] sm:$0xf]
    %v268 = vld [vmem:[#allocation6 + $0x144] sm:$0xf]
    %v269 = vld [vmem:[#allocation6 + $0x148] sm:$0xf]
    %v270 = vld [vmem:[#allocation6 + $0x14c] sm:$0xf]
    %v271 = vld [vmem:[#allocation6 + $0x150] sm:$0xf]
    %v272 = vld [vmem:[#allocation6 + $0x154] sm:$0xf]
    %v273 = vld [vmem:[#allocation6 + $0x158] sm:$0xf]
    %v274 = vld [vmem:[#allocation6 + $0x15c] sm:$0xf]
    %v275 = vld [vmem:[#allocation6 + $0x160] sm:$0xf]
    %v276 = vld [vmem:[#allocation6 + $0x164] sm:$0xf]
    %v277 = vld [vmem:[#allocation6 + $0x168] sm:$0xf]
    %v278 = vld [vmem:[#allocation6 + $0x16c] sm:$0xf]
    %v279 = vld [vmem:[#allocation6 + $0x170] sm:$0xf]
    %v280 = vld [vmem:[#allocation6 + $0x174] sm:$0xf]
    %v281 = vld [vmem:[#allocation6 + $0x178] sm:$0xf]
    %v282 = vld [vmem:[#allocation6 + $0x17c] sm:$0xf]
    %v283 = vld [vmem:[#allocation6 + $0x180] sm:$0xf]
    %v284 = vld [vmem:[#allocation6 + $0x184] sm:$0xf]
    %v285 = vld [vmem:[#allocation6 + $0x188] sm:$0xf]
    %v286 = vld [vmem:[#allocation6 + $0x18c] sm:$0xf]
    %v287 = vld [vmem:[#allocation6 + $0x190] sm:$0xf]
    %v288 = vld [vmem:[#allocation6 + $0x194] sm:$0xf]
    %v289 = vld [vmem:[#allocation6 + $0x198] sm:$0xf]
    %v290 = vld [vmem:[#allocation6 + $0x19c] sm:$0xf]
    %v291 = vld [vmem:[#allocation6 + $0x1a0] sm:$0xf]
    %v292 = vld [vmem:[#allocation6 + $0x1a4] sm:$0xf]
    %v293 = vld [vmem:[#allocation6 + $0x1a8] sm:$0xf]
    %v294 = vld [vmem:[#allocation6 + $0x1ac] sm:$0xf]
    %v295 = vld [vmem:[#allocation6 + $0x1b0] sm:$0xf]
    %v296 = vld [vmem:[#allocation6 + $0x1b4] sm:$0xf]
    %v297 = vld [vmem:[#allocation6 + $0x1b8] sm:$0xf]
    %v298 = vld [vmem:[#allocation6 + $0x1bc] sm:$0xf]
    %v299 = vld [vmem:[#allocation6 + $0x1c0] sm:$0xf]
    %v300 = vld [vmem:[#allocation6 + $0x1c4] sm:$0xf]
    %v301 = vld [vmem:[#allocation6 + $0x1c8] sm:$0xf]
    %v302 = vld [vmem:[#allocation6 + $0x1cc] sm:$0xf]
    %v303 = vld [vmem:[#allocation6 + $0x1d0] sm:$0xf]
    %v304 = vld [vmem:[#allocation6 + $0x1d4] sm:$0xf]
    %v305 = vld [vmem:[#allocation6 + $0x1d8] sm:$0xf]
    %v306 = vld [vmem:[#allocation6 + $0x1dc] sm:$0xf]
    %v307 = vld [vmem:[#allocation6 + $0x1e0] sm:$0xf]
    %v308 = vld [vmem:[#allocation6 + $0x1e4] sm:$0xf]
    %v309 = vld [vmem:[#allocation6 + $0x1e8] sm:$0xf]
    %v310 = vld [vmem:[#allocation6 + $0x1ec] sm:$0xf]
    %v311 = vld [vmem:[#allocation6 + $0x1f0] sm:$0xf]
    %v312 = vld [vmem:[#allocation6 + $0x1f4] sm:$0xf]
    %v313 = vld [vmem:[#allocation6 + $0x1f8] sm:$0xf]
    %v314 = vld [vmem:[#allocation6 + $0x1fc] sm:$0xf]
    %v315 = vlaneseq
    %v316 = vshrl.u32 %v315, 7
    %v317 = vsub.s32 0, %v316
    %v318 = vrot.slane %v81, %v317
    %v447 = vunpack.c.l.b16 %v187
    %v448 = vunpack.c.l.b16 %v188
    %v449 = vunpack.c.l.b16 %v189
    %v450 = vunpack.c.l.b16 %v190
    %v451 = vunpack.c.l.b16 %v191
    %v452 = vunpack.c.l.b16 %v192
    %v453 = vunpack.c.l.b16 %v193
    %v454 = vunpack.c.l.b16 %v194
    %v455 = vunpack.c.l.b16 %v195
    %v456 = vunpack.c.l.b16 %v196
    %v457 = vunpack.c.l.b16 %v197
    %v458 = vunpack.c.l.b16 %v198
    %v459 = vunpack.c.l.b16 %v199
    %v460 = vunpack.c.l.b16 %v200
    %v461 = vunpack.c.l.b16 %v201
    %v462 = vunpack.c.l.b16 %v202
    %v463 = vunpack.c.l.b16 %v203
    %v464 = vunpack.c.l.b16 %v204
    %v465 = vunpack.c.l.b16 %v205
    %v466 = vunpack.c.l.b16 %v206
    %v467 = vunpack.c.l.b16 %v207
    %v468 = vunpack.c.l.b16 %v208
    %v469 = vunpack.c.l.b16 %v209
    %v470 = vunpack.c.l.b16 %v210
    %v471 = vunpack.c.l.b16 %v211
    %v472 = vunpack.c.l.b16 %v212
    %v473 = vunpack.c.l.b16 %v213
    %v474 = vunpack.c.l.b16 %v214
    %v475 = vunpack.c.l.b16 %v215
    %v476 = vunpack.c.l.b16 %v216
    %v477 = vunpack.c.l.b16 %v217
    %v478 = vunpack.c.l.b16 %v218
    %v479 = vunpack.c.l.b16 %v219
    %v480 = vunpack.c.l.b16 %v220
    %v481 = vunpack.c.l.b16 %v221
    %v482 = vunpack.c.l.b16 %v222
    %v483 = vunpack.c.l.b16 %v223
    %v484 = vunpack.c.l.b16 %v224
    %v485 = vunpack.c.l.b16 %v225
    %v486 = vunpack.c.l.b16 %v226
    %v487 = vunpack.c.l.b16 %v227
    %v488 = vunpack.c.l.b16 %v228
    %v489 = vunpack.c.l.b16 %v229
    %v490 = vunpack.c.l.b16 %v230
    %v491 = vunpack.c.l.b16 %v231
    %v492 = vunpack.c.l.b16 %v232
    %v493 = vunpack.c.l.b16 %v233
    %v494 = vunpack.c.l.b16 %v234
    %v495 = vunpack.c.l.b16 %v235
    %v496 = vunpack.c.l.b16 %v236
    %v497 = vunpack.c.l.b16 %v237
    %v498 = vunpack.c.l.b16 %v238
    %v499 = vunpack.c.l.b16 %v239
    %v500 = vunpack.c.l.b16 %v240
    %v501 = vunpack.c.l.b16 %v241
    %v502 = vunpack.c.l.b16 %v242
    %v503 = vunpack.c.l.b16 %v243
    %v504 = vunpack.c.l.b16 %v244
    %v505 = vunpack.c.l.b16 %v245
    %v506 = vunpack.c.l.b16 %v246
    %v507 = vunpack.c.l.b16 %v247
    %v508 = vunpack.c.l.b16 %v248
    %v509 = vunpack.c.l.b16 %v249
    %v510 = vunpack.c.l.b16 %v250
    %v511 = vunpack.c.l.b16 %v251
    %v512 = vunpack.c.l.b16 %v252
    %v513 = vunpack.c.l.b16 %v253
    %v514 = vunpack.c.l.b16 %v254
    %v515 = vunpack.c.l.b16 %v255
    %v516 = vunpack.c.l.b16 %v256
    %v517 = vunpack.c.l.b16 %v257
    %v518 = vunpack.c.l.b16 %v258
    %v519 = vunpack.c.l.b16 %v259
    %v520 = vunpack.c.l.b16 %v260
    %v521 = vunpack.c.l.b16 %v261
    %v522 = vunpack.c.l.b16 %v262
    %v523 = vunpack.c.l.b16 %v263
    %v524 = vunpack.c.l.b16 %v264
    %v525 = vunpack.c.l.b16 %v265
    %v526 = vunpack.c.l.b16 %v266
    %v527 = vunpack.c.l.b16 %v267
    %v528 = vunpack.c.l.b16 %v268
    %v529 = vunpack.c.l.b16 %v269
    %v530 = vunpack.c.l.b16 %v270
    %v531 = vunpack.c.l.b16 %v271
    %v532 = vunpack.c.l.b16 %v272
    %v533 = vunpack.c.l.b16 %v273
    %v534 = vunpack.c.l.b16 %v274
    %v535 = vunpack.c.l.b16 %v275
    %v536 = vunpack.c.l.b16 %v276
    %v537 = vunpack.c.l.b16 %v277
    %v538 = vunpack.c.l.b16 %v278
    %v539 = vunpack.c.l.b16 %v279
    %v540 = vunpack.c.l.b16 %v280
    %v541 = vunpack.c.l.b16 %v281
    %v542 = vunpack.c.l.b16 %v282
    %v543 = vunpack.c.l.b16 %v283
    %v544 = vunpack.c.l.b16 %v284
    %v545 = vunpack.c.l.b16 %v285
    %v546 = vunpack.c.l.b16 %v286
    %v547 = vunpack.c.l.b16 %v287
    %v548 = vunpack.c.l.b16 %v288
    %v549 = vunpack.c.l.b16 %v289
    %v550 = vunpack.c.l.b16 %v290
    %v551 = vunpack.c.l.b16 %v291
    %v552 = vunpack.c.l.b16 %v292
    %v553 = vunpack.c.l.b16 %v293
    %v554 = vunpack.c.l.b16 %v294
    %v555 = vunpack.c.l.b16 %v295
    %v556 = vunpack.c.l.b16 %v296
    %v557 = vunpack.c.l.b16 %v297
    %v558 = vunpack.c.l.b16 %v298
    %v559 = vunpack.c.l.b16 %v299
    %v560 = vunpack.c.l.b16 %v300
    %v561 = vunpack.c.l.b16 %v301
    %v562 = vunpack.c.l.b16 %v302
    %v563 = vunpack.c.l.b16 %v303
    %v564 = vunpack.c.l.b16 %v304
    %v565 = vunpack.c.l.b16 %v305
    %v566 = vunpack.c.l.b16 %v306
    %v567 = vunpack.c.l.b16 %v307
    %v568 = vunpack.c.l.b16 %v308
    %v569 = vunpack.c.l.b16 %v309
    %v570 = vunpack.c.l.b16 %v310
    %v571 = vunpack.c.l.b16 %v311
    %v572 = vunpack.c.l.b16 %v312
    %v573 = vunpack.c.l.b16 %v313
    %v574 = vunpack.c.l.b16 %v314
    %v575 = vpack.c.b16 %v448, %v447
    %v576 = vpack.c.b16 %v450, %v449
    %v577 = vpack.c.b16 %v452, %v451
    %v578 = vpack.c.b16 %v454, %v453
    %v579 = vpack.c.b16 %v456, %v455
    %v580 = vpack.c.b16 %v458, %v457
    %v581 = vpack.c.b16 %v460, %v459
    %v582 = vpack.c.b16 %v462, %v461
    %v583 = vpack.c.b16 %v464, %v463
    %v584 = vpack.c.b16 %v466, %v465
    %v585 = vpack.c.b16 %v468, %v467
    %v586 = vpack.c.b16 %v470, %v469
    %v587 = vpack.c.b16 %v472, %v471
    %v588 = vpack.c.b16 %v474, %v473
    %v589 = vpack.c.b16 %v476, %v475
    %v590 = vpack.c.b16 %v478, %v477
    %v591 = vpack.c.b16 %v480, %v479
    %v592 = vpack.c.b16 %v482, %v481
    %v593 = vpack.c.b16 %v484, %v483
    %v594 = vpack.c.b16 %v486, %v485
    %v595 = vpack.c.b16 %v488, %v487
    %v596 = vpack.c.b16 %v490, %v489
    %v597 = vpack.c.b16 %v492, %v491
    %v598 = vpack.c.b16 %v494, %v493
    %v599 = vpack.c.b16 %v496, %v495
    %v600 = vpack.c.b16 %v498, %v497
    %v601 = vpack.c.b16 %v500, %v499
    %v602 = vpack.c.b16 %v502, %v501
    %v603 = vpack.c.b16 %v504, %v503
    %v604 = vpack.c.b16 %v506, %v505
    %v605 = vpack.c.b16 %v508, %v507
    %v606 = vpack.c.b16 %v510, %v509
    %v607 = vpack.c.b16 %v512, %v511
    %v608 = vpack.c.b16 %v514, %v513
    %v609 = vpack.c.b16 %v516, %v515
    %v610 = vpack.c.b16 %v518, %v517
    %v611 = vpack.c.b16 %v520, %v519
    %v612 = vpack.c.b16 %v522, %v521
    %v613 = vpack.c.b16 %v524, %v523
    %v614 = vpack.c.b16 %v526, %v525
    %v615 = vpack.c.b16 %v528, %v527
    %v616 = vpack.c.b16 %v530, %v529
    %v617 = vpack.c.b16 %v532, %v531
    %v618 = vpack.c.b16 %v534, %v533
    %v619 = vpack.c.b16 %v536, %v535
    %v620 = vpack.c.b16 %v538, %v537
    %v621 = vpack.c.b16 %v540, %v539
    %v622 = vpack.c.b16 %v542, %v541
    %v623 = vpack.c.b16 %v544, %v543
    %v624 = vpack.c.b16 %v546, %v545
    %v625 = vpack.c.b16 %v548, %v547
    %v626 = vpack.c.b16 %v550, %v549
    %v627 = vpack.c.b16 %v552, %v551
    %v628 = vpack.c.b16 %v554, %v553
    %v629 = vpack.c.b16 %v556, %v555
    %v630 = vpack.c.b16 %v558, %v557
    %v631 = vpack.c.b16 %v560, %v559
    %v632 = vpack.c.b16 %v562, %v561
    %v633 = vpack.c.b16 %v564, %v563
    %v634 = vpack.c.b16 %v566, %v565
    %v635 = vpack.c.b16 %v568, %v567
    %v636 = vpack.c.b16 %v570, %v569
    %v637 = vpack.c.b16 %v572, %v571
    %v638 = vpack.c.b16 %v574, %v573
    %703 = vmatprep.subr.bf16.mxu0 0
    %704 = vmatpush1.bf16.msra.mxu0 %v575
    %705 = vmatprep.subr.bf16.mxu0 0
    %706 = vmatpush1.bf16.msra.mxu0 %v576
    %707 = vmatprep.subr.bf16.mxu0 0
    %708 = vmatpush1.bf16.msra.mxu0 %v577
    %709 = vmatprep.subr.bf16.mxu0 0
    %710 = vmatpush1.bf16.msra.mxu0 %v578
    %711 = vmatprep.subr.bf16.mxu0 0
    %712 = vmatpush1.bf16.msra.mxu0 %v579
    %713 = vmatprep.subr.bf16.mxu0 0
    %714 = vmatpush1.bf16.msra.mxu0 %v580
    %715 = vmatprep.subr.bf16.mxu0 0
    %716 = vmatpush1.bf16.msra.mxu0 %v581
    %717 = vmatprep.subr.bf16.mxu0 0
    %718 = vmatpush1.bf16.msra.mxu0 %v582
    %719 = vmatprep.subr.bf16.mxu0 0
    %720 = vmatpush1.bf16.msra.mxu0 %v583
    %721 = vmatprep.subr.bf16.mxu0 0
    %722 = vmatpush1.bf16.msra.mxu0 %v584
    %723 = vmatprep.subr.bf16.mxu0 0
    %724 = vmatpush1.bf16.msra.mxu0 %v585
    %725 = vmatprep.subr.bf16.mxu0 0
    %726 = vmatpush1.bf16.msra.mxu0 %v586
    %727 = vmatprep.subr.bf16.mxu0 0
    %728 = vmatpush1.bf16.msra.mxu0 %v587
    %729 = vmatprep.subr.bf16.mxu0 0
    %730 = vmatpush1.bf16.msra.mxu0 %v588
    %731 = vmatprep.subr.bf16.mxu0 0
    %732 = vmatpush1.bf16.msra.mxu0 %v589
    %733 = vmatprep.subr.bf16.mxu0 0
    %734 = vmatpush1.bf16.msra.mxu0 %v590
    %735 = vmatprep.mubr.bf16.mxu0 %v180
    %736 = vmatmul.mubr.bf16.gmra.mrb[0].mxu0 %v179
    %v737 = vpop.f32.mrb[0].mxu0
    %v738 = vadd.f32 %v318, %v737
    %v739 = vpop.f32.mrb[0].mxu0
    %v740 = vpop.f32.mrb[0].mxu0
    %v741 = vpop.f32.mrb[0].mxu0
    %742 = vdwg.mxu0
    %743 = vmatprep.subr.bf16.mxu0 0
    %744 = vmatpush1.bf16.msra.mxu0 %v591
    %745 = vmatprep.subr.bf16.mxu0 0
    %746 = vmatpush1.bf16.msra.mxu0 %v592
    %747 = vmatprep.subr.bf16.mxu0 0
    %748 = vmatpush1.bf16.msra.mxu0 %v593
    %749 = vmatprep.subr.bf16.mxu0 0
    %750 = vmatpush1.bf16.msra.mxu0 %v594
    %751 = vmatprep.subr.bf16.mxu0 0
    %752 = vmatpush1.bf16.msra.mxu0 %v595
    %753 = vmatprep.subr.bf16.mxu0 0
    %754 = vmatpush1.bf16.msra.mxu0 %v596
    %755 = vmatprep.subr.bf16.mxu0 0
    %756 = vmatpush1.bf16.msra.mxu0 %v597
    %757 = vmatprep.subr.bf16.mxu0 0
    %758 = vmatpush1.bf16.msra.mxu0 %v598
    %759 = vmatprep.subr.bf16.mxu0 0
    %760 = vmatpush1.bf16.msra.mxu0 %v599
    %761 = vmatprep.subr.bf16.mxu0 0
    %762 = vmatpush1.bf16.msra.mxu0 %v600
    %763 = vmatprep.subr.bf16.mxu0 0
    %764 = vmatpush1.bf16.msra.mxu0 %v601
    %765 = vmatprep.subr.bf16.mxu0 0
    %766 = vmatpush1.bf16.msra.mxu0 %v602
    %767 = vmatprep.subr.bf16.mxu0 0
    %768 = vmatpush1.bf16.msra.mxu0 %v603
    %769 = vmatprep.subr.bf16.mxu0 0
    %770 = vmatpush1.bf16.msra.mxu0 %v604
    %771 = vmatprep.subr.bf16.mxu0 0
    %772 = vmatpush1.bf16.msra.mxu0 %v605
    %773 = vmatprep.subr.bf16.mxu0 0
    %774 = vmatpush1.bf16.msra.mxu0 %v606
    %775 = vmatprep.mubr.bf16.mxu0 %v182
    %776 = vmatmul.mubr.bf16.gmra.mrb[0].mxu0 %v181
    %v777 = vpop.f32.mrb[0].mxu0
    %v778 = vadd.f32 %v738, %v777
    %v779 = vpop.f32.mrb[0].mxu0
    %v780 = vpop.f32.mrb[0].mxu0
    %v781 = vpop.f32.mrb[0].mxu0
    %782 = vdwg.mxu0
    %783 = vmatprep.subr.bf16.mxu0 0
    %784 = vmatpush1.bf16.msra.mxu0 %v607
    %785 = vmatprep.subr.bf16.mxu0 0
    %786 = vmatpush1.bf16.msra.mxu0 %v608
    %787 = vmatprep.subr.bf16.mxu0 0
    %788 = vmatpush1.bf16.msra.mxu0 %v609
    %789 = vmatprep.subr.bf16.mxu0 0
    %790 = vmatpush1.bf16.msra.mxu0 %v610
    %791 = vmatprep.subr.bf16.mxu0 0
    %792 = vmatpush1.bf16.msra.mxu0 %v611
    %793 = vmatprep.subr.bf16.mxu0 0
    %794 = vmatpush1.bf16.msra.mxu0 %v612
    %795 = vmatprep.subr.bf16.mxu0 0
    %796 = vmatpush1.bf16.msra.mxu0 %v613
    %797 = vmatprep.subr.bf16.mxu0 0
    %798 = vmatpush1.bf16.msra.mxu0 %v614
    %799 = vmatprep.subr.bf16.mxu0 0
    %800 = vmatpush1.bf16.msra.mxu0 %v615
    %801 = vmatprep.subr.bf16.mxu0 0
    %802 = vmatpush1.bf16.msra.mxu0 %v616
    %803 = vmatprep.subr.bf16.mxu0 0
    %804 = vmatpush1.bf16.msra.mxu0 %v617
    %805 = vmatprep.subr.bf16.mxu0 0
    %806 = vmatpush1.bf16.msra.mxu0 %v618
    %807 = vmatprep.subr.bf16.mxu0 0
    %808 = vmatpush1.bf16.msra.mxu0 %v619
    %809 = vmatprep.subr.bf16.mxu0 0
    %810 = vmatpush1.bf16.msra.mxu0 %v620
    %811 = vmatprep.subr.bf16.mxu0 0
    %812 = vmatpush1.bf16.msra.mxu0 %v621
    %813 = vmatprep.subr.bf16.mxu0 0
    %814 = vmatpush1.bf16.msra.mxu0 %v622
    %815 = vmatprep.mubr.bf16.mxu0 %v184
    %816 = vmatmul.mubr.bf16.gmra.mrb[0].mxu0 %v183
    %v817 = vpop.f32.mrb[0].mxu0
    %v818 = vadd.f32 %v778, %v817
    %v819 = vpop.f32.mrb[0].mxu0
    %v820 = vpop.f32.mrb[0].mxu0
    %v821 = vpop.f32.mrb[0].mxu0
    %822 = vdwg.mxu0
    %823 = vmatprep.subr.bf16.mxu0 0
    %824 = vmatpush1.bf16.msra.mxu0 %v623
    %825 = vmatprep.subr.bf16.mxu0 0
    %826 = vmatpush1.bf16.msra.mxu0 %v624
    %827 = vmatprep.subr.bf16.mxu0 0
    %828 = vmatpush1.bf16.msra.mxu0 %v625
    %829 = vmatprep.subr.bf16.mxu0 0
    %830 = vmatpush1.bf16.msra.mxu0 %v626
    %831 = vmatprep.subr.bf16.mxu0 0
    %832 = vmatpush1.bf16.msra.mxu0 %v627
    %833 = vmatprep.subr.bf16.mxu0 0
    %834 = vmatpush1.bf16.msra.mxu0 %v628
    %835 = vmatprep.subr.bf16.mxu0 0
    %836 = vmatpush1.bf16.msra.mxu0 %v629
    %837 = vmatprep.subr.bf16.mxu0 0
    %838 = vmatpush1.bf16.msra.mxu0 %v630
    %839 = vmatprep.subr.bf16.mxu0 0
    %840 = vmatpush1.bf16.msra.mxu0 %v631
    %841 = vmatprep.subr.bf16.mxu0 0
    %842 = vmatpush1.bf16.msra.mxu0 %v632
    %843 = vmatprep.subr.bf16.mxu0 0
    %844 = vmatpush1.bf16.msra.mxu0 %v633
    %845 = vmatprep.subr.bf16.mxu0 0
    %846 = vmatpush1.bf16.msra.mxu0 %v634
    %847 = vmatprep.subr.bf16.mxu0 0
    %848 = vmatpush1.bf16.msra.mxu0 %v635
    %849 = vmatprep.subr.bf16.mxu0 0
    %850 = vmatpush1.bf16.msra.mxu0 %v636
    %851 = vmatprep.subr.bf16.mxu0 0
    %852 = vmatpush1.bf16.msra.mxu0 %v637
    %853 = vmatprep.subr.bf16.mxu0 0
    %854 = vmatpush1.bf16.msra.mxu0 %v638
    %855 = vmatprep.mubr.bf16.mxu0 %v186
    %856 = vmatmul.mubr.bf16.gmra.mrb[0].mxu0 %v185
    %v857 = vpop.f32.mrb[0].mxu0
    %v858 = vadd.f32 %v818, %v857
    %v859 = vpop.f32.mrb[0].mxu0
    %v860 = vpop.f32.mrb[0].mxu0
    %v861 = vpop.f32.mrb[0].mxu0
    %862 = vdwg.mxu0
    %v863 = vpack.c.bf16 %v858, %v858
    %v864 = vld [vmem:[#allocation8] sm:$0xf]
    %v865 = vld [vmem:[#allocation8 + $0x4] sm:$0xf]
    %v866 = vld [vmem:[#allocation8 + $0x8] sm:$0xf]
    %v867 = vld [vmem:[#allocation8 + $0xc] sm:$0xf]
    %v868 = vld [vmem:[#allocation8 + $0x10] sm:$0xf]
    %v869 = vld [vmem:[#allocation8 + $0x14] sm:$0xf]
    %v870 = vld [vmem:[#allocation8 + $0x18] sm:$0xf]
    %v871 = vld [vmem:[#allocation8 + $0x1c] sm:$0xf]
    %v872 = vld [vmem:[#allocation8 + $0x20] sm:$0xf]
    %v873 = vld [vmem:[#allocation8 + $0x24] sm:$0xf]
    %v874 = vld [vmem:[#allocation8 + $0x28] sm:$0xf]
    %v875 = vld [vmem:[#allocation8 + $0x2c] sm:$0xf]
    %v876 = vld [vmem:[#allocation8 + $0x30] sm:$0xf]
    %v877 = vld [vmem:[#allocation8 + $0x34] sm:$0xf]
    %v878 = vld [vmem:[#allocation8 + $0x38] sm:$0xf]
    %v879 = vld [vmem:[#allocation8 + $0x3c] sm:$0xf]
    %v880 = vlaneseq
    %v881 = vshrl.u32 %v880, 7
    %v882 = vsub.s32 1, %v881
    %v883 = vrot.slane %v81, %v882
    %v900 = vunpack.c.l.b16 %v864
    %v901 = vunpack.c.l.b16 %v865
    %v902 = vunpack.c.l.b16 %v866
    %v903 = vunpack.c.l.b16 %v867
    %v904 = vunpack.c.l.b16 %v868
    %v905 = vunpack.c.l.b16 %v869
    %v906 = vunpack.c.l.b16 %v870
    %v907 = vunpack.c.l.b16 %v871
    %v908 = vunpack.c.l.b16 %v872
    %v909 = vunpack.c.l.b16 %v873
    %v910 = vunpack.c.l.b16 %v874
    %v911 = vunpack.c.l.b16 %v875
    %v912 = vunpack.c.l.b16 %v876
    %v913 = vunpack.c.l.b16 %v877
    %v914 = vunpack.c.l.b16 %v878
    %v915 = vunpack.c.l.b16 %v879
    %v916 = vpack.c.b16 %v901, %v900
    %v917 = vpack.c.b16 %v903, %v902
    %v918 = vpack.c.b16 %v905, %v904
    %v919 = vpack.c.b16 %v907, %v906
    %v920 = vpack.c.b16 %v909, %v908
    %v921 = vpack.c.b16 %v911, %v910
    %v922 = vpack.c.b16 %v913, %v912
    %v923 = vpack.c.b16 %v915, %v914
    %932 = vmatprep.subr.bf16.mxu0 0
    %933 = vmatpush1.bf16.msra.mxu0 %v916
    %934 = vmatprep.subr.bf16.mxu0 0
    %935 = vmatpush1.bf16.msra.mxu0 %v917
    %936 = vmatprep.subr.bf16.mxu0 0
    %937 = vmatpush1.bf16.msra.mxu0 %v918
    %938 = vmatprep.subr.bf16.mxu0 0
    %939 = vmatpush1.bf16.msra.mxu0 %v919
    %940 = vmatprep.subr.bf16.mxu0 0
    %941 = vmatpush1.bf16.msra.mxu0 %v920
    %942 = vmatprep.subr.bf16.mxu0 0
    %943 = vmatpush1.bf16.msra.mxu0 %v921
    %944 = vmatprep.subr.bf16.mxu0 0
    %945 = vmatpush1.bf16.msra.mxu0 %v922
    %946 = vmatprep.subr.bf16.mxu0 0
    %947 = vmatpush1.bf16.msra.mxu0 %v923
    %948 = vmatprep.subr.bf16.mxu0 0
    %949 = vmatpush1.bf16.msra.mxu0 0
    %950 = vmatprep.subr.bf16.mxu0 0
    %951 = vmatpush1.bf16.msra.mxu0 0
    %952 = vmatprep.subr.bf16.mxu0 0
    %953 = vmatpush1.bf16.msra.mxu0 0
    %954 = vmatprep.subr.bf16.mxu0 0
    %955 = vmatpush1.bf16.msra.mxu0 0
    %956 = vmatprep.subr.bf16.mxu0 0
    %957 = vmatpush1.bf16.msra.mxu0 0
    %958 = vmatprep.subr.bf16.mxu0 0
    %959 = vmatpush1.bf16.msra.mxu0 0
    %960 = vmatprep.subr.bf16.mxu0 0
    %961 = vmatpush1.bf16.msra.mxu0 0
    %962 = vmatprep.subr.bf16.mxu0 0
    %963 = vmatpush1.bf16.msra.mxu0 0
    %964 = vmatprep.mubr.bf16.mxu0 0
    %965 = vmatmul.mubr.bf16.gmra.mrb[0].mxu0 %v863
    %v966 = vpop.f32.mrb[0].mxu0
    %v967 = vadd.f32 %v883, %v966
    %v968 = vpop.f32.mrb[0].mxu0
    %v969 = vpop.f32.mrb[0].mxu0
    %v970 = vpop.f32.mrb[0].mxu0
    %971 = vdwg.mxu0
    %v972 = vmax.f32 %v967, 0.0
    %v973 = vpack.c.bf16 %v972, %v972
    %v974 = vld [vmem:[#allocation9] sm:$0xf]
    %v975 = vld [vmem:[#allocation9 + $0x4] sm:$0xf]
    %v976 = vld [vmem:[#allocation9 + $0x8] sm:$0xf]
    %v977 = vld [vmem:[#allocation9 + $0xc] sm:$0xf]
    %v978 = vld [vmem:[#allocation9 + $0x10] sm:$0xf]
    %v979 = vld [vmem:[#allocation9 + $0x14] sm:$0xf]
    %v980 = vld [vmem:[#allocation9 + $0x18] sm:$0xf]
    %v981 = vld [vmem:[#allocation9 + $0x1c] sm:$0xf]
    %v982 = vld [vmem:[#allocation9 + $0x20] sm:$0xf]
    %v983 = vld [vmem:[#allocation9 + $0x24] sm:$0xf]
    %v984 = vld [vmem:[#allocation9 + $0x28] sm:$0xf]
    %v985 = vld [vmem:[#allocation9 + $0x2c] sm:$0xf]
    %v986 = vld [vmem:[#allocation9 + $0x30] sm:$0xf]
    %v987 = vld [vmem:[#allocation9 + $0x34] sm:$0xf]
    %v988 = vld [vmem:[#allocation9 + $0x38] sm:$0xf]
    %v989 = vld [vmem:[#allocation9 + $0x3c] sm:$0xf]
    %v990 = vlaneseq
    %v991 = vshrl.u32 %v990, 7
    %v992 = vsub.s32 2, %v991
    %v993 = vrot.slane %v81, %v992
    %v1010 = vunpack.c.l.b16 %v974
    %v1011 = vunpack.c.l.b16 %v975
    %v1012 = vunpack.c.l.b16 %v976
    %v1013 = vunpack.c.l.b16 %v977
    %v1014 = vunpack.c.l.b16 %v978
    %v1015 = vunpack.c.l.b16 %v979
    %v1016 = vunpack.c.l.b16 %v980
    %v1017 = vunpack.c.l.b16 %v981
    %v1018 = vunpack.c.l.b16 %v982
    %v1019 = vunpack.c.l.b16 %v983
    %v1020 = vunpack.c.l.b16 %v984
    %v1021 = vunpack.c.l.b16 %v985
    %v1022 = vunpack.c.l.b16 %v986
    %v1023 = vunpack.c.l.b16 %v987
    %v1024 = vunpack.c.l.b16 %v988
    %v1025 = vunpack.c.l.b16 %v989
    %v1026 = vpack.c.b16 %v1011, %v1010
    %v1027 = vpack.c.b16 %v1013, %v1012
    %v1028 = vpack.c.b16 %v1015, %v1014
    %v1029 = vpack.c.b16 %v1017, %v1016
    %v1030 = vpack.c.b16 %v1019, %v1018
    %v1031 = vpack.c.b16 %v1021, %v1020
    %v1032 = vpack.c.b16 %v1023, %v1022
    %v1033 = vpack.c.b16 %v1025, %v1024
    %1042 = vmatprep.subr.bf16.mxu0 0
    %1043 = vmatpush1.bf16.msra.mxu0 %v1026
    %1044 = vmatprep.subr.bf16.mxu0 0
    %1045 = vmatpush1.bf16.msra.mxu0 %v1027
    %1046 = vmatprep.subr.bf16.mxu0 0
    %1047 = vmatpush1.bf16.msra.mxu0 %v1028
    %1048 = vmatprep.subr.bf16.mxu0 0
    %1049 = vmatpush1.bf16.msra.mxu0 %v1029
    %1050 = vmatprep.subr.bf16.mxu0 0
    %1051 = vmatpush1.bf16.msra.mxu0 %v1030
    %1052 = vmatprep.subr.bf16.mxu0 0
    %1053 = vmatpush1.bf16.msra.mxu0 %v1031
    %1054 = vmatprep.subr.bf16.mxu0 0
    %1055 = vmatpush1.bf16.msra.mxu0 %v1032
    %1056 = vmatprep.subr.bf16.mxu0 0
    %1057 = vmatpush1.bf16.msra.mxu0 %v1033
    %1058 = vmatprep.subr.bf16.mxu0 0
    %1059 = vmatpush1.bf16.msra.mxu0 0
    %1060 = vmatprep.subr.bf16.mxu0 0
    %1061 = vmatpush1.bf16.msra.mxu0 0
    %1062 = vmatprep.subr.bf16.mxu0 0
    %1063 = vmatpush1.bf16.msra.mxu0 0
    %1064 = vmatprep.subr.bf16.mxu0 0
    %1065 = vmatpush1.bf16.msra.mxu0 0
    %1066 = vmatprep.subr.bf16.mxu0 0
    %1067 = vmatpush1.bf16.msra.mxu0 0
    %1068 = vmatprep.subr.bf16.mxu0 0
    %1069 = vmatpush1.bf16.msra.mxu0 0
    %1070 = vmatprep.subr.bf16.mxu0 0
    %1071 = vmatpush1.bf16.msra.mxu0 0
    %1072 = vmatprep.subr.bf16.mxu0 0
    %1073 = vmatpush1.bf16.msra.mxu0 0
    %1074 = vmatprep.mubr.bf16.mxu0 0
    %1075 = vmatmul.mubr.bf16.gmra.mrb[0].mxu0 %v973
    %v1076 = vpop.f32.mrb[0].mxu0
    %v1077 = vadd.f32 %v993, %v1076
    %v1078 = vpop.f32.mrb[0].mxu0
    %v1079 = vpop.f32.mrb[0].mxu0
    %v1080 = vpop.f32.mrb[0].mxu0
    %1081 = vdwg.mxu0
    %v1082 = vmax.f32 %v1077, 0.0
    %v1083 = vlaneseq
    %v1084 = vshrl.u32 %v1083, 7
    %v1085 = vsub.s32 3, %v1084
    %v1086 = vrot.slane %v81, %v1085
    %v1087 = vmul.f32 %v1082, %v1086
    %1088 = vadd.xlane.f32.xlu0 %v1087
    %v1089 = vpop.xlane.xlu0 %1088
    %v1090 = vstv %s82
    %v1091 = vadd.f32 %v1089, %v1090
    %1092 = vst [vmem:[#allocation11] sm:$0xff] %v1091
    // Predicated region
    $region42: #{tpu_custom_call.1} parent=1 // pred_check
      _
    $region43: #{tpu_custom_call.1} parent=1 // pred_check_branch
      %1094 = sbr.rel (0) target = $region45
    $region44: #{tpu_custom_call.1} parent=1 // pred_region
      %s1096 = ssub.s32 128, 32
      %1097 = vsyncadd [#allocation5], %s1096
      %s1098 = sshll.u32 [#allocation11], 4
      %s1099 = int_to_ptr.vmem [resolvable:$true] %s1098
      %1104 = dma.vmem_to_hbm [thread:$0]  %s1099, 32, %s6, [#allocation5], 32, 32, 2
    $region45: #{tpu_custom_call.1} parent=1 // pred_fallthru
      _
    // Predicated region
    $region46: #{tpu_custom_call.1} parent=1 // pred_check
      _
    $region47: #{tpu_custom_call.1} parent=1 // pred_check_branch
      %1106 = sbr.rel (0) target = $region49
    $region48: #{tpu_custom_call.1} parent=1 // pred_region
      %1107 = dma.done [#allocation5], 128
    $region49: #{tpu_custom_call.1} parent=1 // pred_fallthru
      _
    %1108 = vsyncpa [#allocation4], 1
    %1109 = vsyncpa [#allocation7], 1
    %1110 = vsyncpa [#allocation10], 1
    %1111 = vsyncpa [#allocation5], 1

</llo_original>
